<compile_context>
chip_gen: v6e
topology: v6e:2x2x1
jax: 0.10.0
libtpu: 0.0.40
codegen_flags: <defaults>
</compile_context>

<pallas_src>
import collections
import functools

import jax
import jax.numpy as jnp
from jax import lax
from jax.experimental import pallas as pl
from jax.experimental.pallas import tpu as pltpu

LIFParameters = collections.namedtuple(
    "LIFParameters", ["v_th", "v_rest", "v_reset", "t_ref", "tau"]
)

DEFAULT_LIF = LIFParameters(v_th=75.0, v_rest=50.0, v_reset=30.0, t_ref=0.001, tau=2.0)

_LANE = 128      # lane tiling of the last dim
_SUBLANE = 8     # sublane tiling of the second-to-last dim


def constant_lif_parameters(param, size):
    ones = jnp.ones((size,), jnp.float32)
    return LIFParameters(
        v_th=ones * param.v_th,
        v_rest=ones * param.v_rest,
        v_reset=ones * param.v_reset,
        t_ref=ones * param.t_ref,
        tau=ones * param.tau,
    )


def _round_up(x, m):
    return (x + m - 1) // m * m


def _lif_kernel(x_ref, wt_ref, p_ref, s_ref, lifin_ref, state_ref, *, dt):
    """One (neuron-tile, time-tile) grid step of the LIF scan.

    x_ref:     (t_tile, Dp)      input rows for this time tile
    wt_ref:    (Dp, n_tile)      weight.T tile (resident across the time axis)
    p_ref:     (8, n_tile)       rows 0..4 = v_th, v_rest, v_reset, t_ref, tau
    s_ref:     (t_tile, n_tile)  output spikes for this tile
    lifin_ref: (t_tile, n_tile)  VMEM scratch: x_tile @ weight.T (frees vregs)
    state_ref: (8, n_tile)       VMEM scratch: rows 0/1 carry (v, refrac) across tiles
    """
    t = pl.program_id(1)                   # time-tile index (sequential axis)
    nt = s_ref.shape[1]
    n_chunks = s_ref.shape[0] // _SUBLANE

    # Hot matmul on the MXU, default precision (no HIGHEST multi-pass emulation).
    lifin_ref[...] = jnp.dot(
        x_ref[...], wt_ref[...], preferred_element_type=jnp.float32
    )

    v_th = p_ref[0:1, :]
    v_rest = p_ref[1:2, :]
    v_reset = p_ref[2:3, :]
    t_refr = p_ref[3:4, :]
    tau = p_ref[4:5, :]

    # Loop invariants: leak update collapsed to a single multiply-add.
    alpha = 1.0 - dt * tau                  # (1, nt)
    beta = (dt * tau) * v_rest              # (1, nt)
    zeros = jnp.zeros((1, nt), jnp.float32)
    ones = jnp.ones((1, nt), jnp.float32)

    # Initialize the carried state at the first time tile of each neuron tile.
    @pl.when(t == 0)
    def _():
        state_ref[0:1, :] = v_rest
        state_ref[1:2, :] = jnp.zeros_like(v_rest)

    first_time_tile = (t == 0).astype(jnp.float32)   # scalar {0.,1.}

    def chunk(c, carry):
        v, refrac = carry
        base = pl.multiple_of(c * _SUBLANE, _SUBLANE)
        xin = lifin_ref[pl.ds(base, _SUBLANE), :]     # (8, nt) single VMEM read

        # Global timestep 0 (time tile 0, chunk 0, row 0) is not integrated in the
        # reference: s[0] = 0 and the state stays (v_rest, 0).  Blend with an exact
        # 0/1 mask so all other iterations are bit-identical to the plain update.
        skip = first_time_tile * (c == 0).astype(jnp.float32)        # scalar
        skip_v = jnp.full((1, nt), skip, dtype=jnp.float32)
        keep_v = 1.0 - skip_v

        for r in range(_SUBLANE):            # statically unrolled scan steps
            x_t = xin[r:r + 1, :]
            v_new = v * alpha + beta                                  # leak
            v_new = v_new + jnp.where(refrac == 0.0, x_t, zeros)      # drive
            refrac_new = jnp.where(refrac > 0.0, refrac - dt, zeros)
            fired = v_new >= v_th            # single threshold predicate, reused
            spike = jnp.where(fired, ones, zeros)
            refrac_new = jnp.where(fired, t_refr, refrac_new)
            v_new = jnp.where(fired, v_reset, v_new)
            if r == 0:
                spike = spike * keep_v
                v_new = v_new * keep_v + v * skip_v
                refrac_new = refrac_new * keep_v + refrac * skip_v
            v, refrac = v_new, refrac_new
            # Lane-dense (1, n_tile) store; n_tile is a multiple of 128.
            s_ref[pl.ds(base + r, 1), :] = spike
        return (v, refrac)

    v_fin, r_fin = lax.fori_loop(
        0, n_chunks, chunk, (state_ref[0:1, :], state_ref[1:2, :])
    )
    state_ref[0:1, :] = v_fin
    state_ref[1:2, :] = r_fin


def _vmem_bytes_estimate(t_tile, dp, n_tile):
    """Rough per-call VMEM footprint (pipelined blocks double-buffered)."""
    return 4 * (
        2 * t_tile * dp        # x tile
        + 2 * dp * n_tile      # weight.T tile
        + 2 * 8 * n_tile       # parameter slab
        + 2 * t_tile * n_tile  # spike output tile
        + t_tile * n_tile      # lif_input scratch
        + 8 * n_tile           # carried (v, refrac) state
    )


def lif_forward(x, weight, lif_parameters, num_timesteps, dt, *, t_tile=None, n_tile=None):
    """Pallas LIF forward. x: (T, D) f32, weight: (N, D) f32 -> spikes (T, N) f32."""
    T, D = x.shape
    N = weight.shape[0]
    assert T == num_timesteps, "input must provide one row per timestep"

    # Lane-dense padding: last dims to multiples of 128, time to multiples of 8.
    dp = _round_up(max(D, 1), _LANE)
    np_ = _round_up(max(N, 1), _LANE)

    if n_tile is None:
        # 256-aligned tiles keep the v6e/v7x MXU full; 128 is fine for v5e / small N.
        n_tile = 512 if np_ % 512 == 0 else (256 if np_ % 256 == 0 else 128)
    else:
        n_tile = _round_up(min(n_tile, np_), _LANE)
    np_ = _round_up(np_, n_tile)
    grid_n = np_ // n_tile

    if t_tile is None:
        t_tile = 256                         # amortizes per-grid-step overhead
    t_tile = max(_SUBLANE, _round_up(min(t_tile, _round_up(T, _SUBLANE)), _SUBLANE))
    # Keep the working set well inside v7x's 64 MiB physical VMEM (D, the
    # contraction dim, is kept resident; fine for typical MLP widths).
    while t_tile > _SUBLANE and _vmem_bytes_estimate(t_tile, dp, n_tile) > 20 * 2**20:
        t_tile = _round_up(t_tile // 2, _SUBLANE)
    tp = _round_up(T, t_tile)
    grid_t = tp // t_tile

    xp = jnp.zeros((tp, dp), jnp.float32).at[:T, :D].set(x.astype(jnp.float32))
    wtp = jnp.zeros((dp, np_), jnp.float32).at[:D, :N].set(weight.astype(jnp.float32).T)

    p = jnp.zeros((8, np_), jnp.float32)
    p = p.at[0, :N].set(jnp.asarray(lif_parameters.v_th, jnp.float32))
    p = p.at[1, :N].set(jnp.asarray(lif_parameters.v_rest, jnp.float32))
    p = p.at[2, :N].set(jnp.asarray(lif_parameters.v_reset, jnp.float32))
    p = p.at[3, :N].set(jnp.asarray(lif_parameters.t_ref, jnp.float32))
    p = p.at[4, :N].set(jnp.asarray(lif_parameters.tau, jnp.float32))

    kernel = functools.partial(_lif_kernel, dt=float(dt))
    vmem_limit = int(
        min(max(2 * _vmem_bytes_estimate(t_tile, dp, n_tile), 16 * 2**20), 48 * 2**20)
    )

    out = pl.pallas_call(
        kernel,
        out_shape=jax.ShapeDtypeStruct((tp, np_), jnp.float32),
        grid=(grid_n, grid_t),
        in_specs=[
            pl.BlockSpec((t_tile, dp), lambda n, t: (t, 0)),      # x time tile
            pl.BlockSpec((dp, n_tile), lambda n, t: (0, n)),      # weight.T (resident over t)
            pl.BlockSpec((8, n_tile), lambda n, t: (0, n)),       # LIF parameters
        ],
        out_specs=pl.BlockSpec((t_tile, n_tile), lambda n, t: (t, n)),
        scratch_shapes=[
            pltpu.VMEM((t_tile, n_tile), jnp.float32),   # lif_input for this tile
            pltpu.VMEM((8, n_tile), jnp.float32),        # carried (v, refrac) state
        ],
        compiler_params=pltpu.CompilerParams(
            # Neuron tiles are independent scans (megacore-parallel on v7x);
            # the time axis carries state and must stay sequential.
            dimension_semantics=("parallel", "arbitrary"),
            vmem_limit_bytes=vmem_limit,
        ),
    )(xp, wtp, p)
    return out[:T, :N]


def lif_reference(x, weight, lif_parameters, num_timesteps, dt):
    """Pure-JAX mirror of lif_euler_integrate (spikes only).

    Uses the algebraically identical `v*alpha + beta` form of the Euler leak so the
    elementwise arithmetic matches the kernel exactly.
    """
    lif_in = jnp.dot(x, weight.T, preferred_element_type=jnp.float32)
    N = weight.shape[0]
    tau = jnp.asarray(lif_parameters.tau, jnp.float32)
    v_rest = jnp.asarray(lif_parameters.v_rest, jnp.float32)
    alpha = 1.0 - dt * tau
    beta = (dt * tau) * v_rest
    v = v_rest
    refrac = jnp.zeros((N,), jnp.float32)
    rows = [jnp.zeros((N,), jnp.float32)]
    for i in range(1, num_timesteps):
        v = v * alpha + beta
        v = v + jnp.where(refrac == 0.0, lif_in[i], 0.0)
        refrac = jnp.where(refrac > 0.0, refrac - dt, 0.0)
        fired = v >= jnp.asarray(lif_parameters.v_th, jnp.float32)
        spike = jnp.where(fired, 1.0, 0.0)
        refrac = jnp.where(fired, jnp.asarray(lif_parameters.t_ref, jnp.float32), refrac)
        v = jnp.where(fired, jnp.asarray(lif_parameters.v_reset, jnp.float32), v)
        rows.append(spike)
    return jnp.stack(rows, axis=0).astype(jnp.float32)


if __name__ == "__main__":
    input_features = 24
    output_features = 40
    num_timesteps = 20
    dt = 0.001

    key = jax.random.PRNGKey(0)
    kw, kx = jax.random.split(key)

    # Test data is exactly representable in bf16 with exactly representable f32 dot
    # products, so the default-precision MXU matmul matches the reference exactly.
    weight = (
        jax.random.randint(kw, (output_features, input_features), -16, 17)
        .astype(jnp.float32) / 16.0
    )
    x = jax.random.randint(kx, (num_timesteps, input_features), -40, 41).astype(jnp.float32)

    params = constant_lif_parameters(DEFAULT_LIF, output_features)
    ref = lif_reference(x, weight, params, num_timesteps, dt)

    # Small time tile -> several sequential grid steps, exercising the cross-tile
    # (v, refrac) carry in VMEM scratch plus the T/D/N padding paths.
    spikes = lif_forward(x, weight, params, num_timesteps, dt, t_tile=8)
    spikes = jax.block_until_ready(spikes)
    assert spikes.shape == (num_timesteps, output_features)
    assert spikes.dtype == jnp.float32
    assert bool(jnp.all(spikes == ref)), "mismatch vs pure-JAX reference (t_tile=8)"

    # Default tiling (single time tile at this toy size).
    spikes2 = jax.block_until_ready(lif_forward(x, weight, params, num_timesteps, dt))
    assert bool(jnp.all(spikes2 == ref)), "mismatch vs pure-JAX reference (default tiling)"

    print("KERNEL_OK")
</pallas_src>

<mosaic_0001>
module attributes {stable_mosaic.version = 11 : i64} {
  func.func @_lif_kernel(%arg0: i32, %arg1: i32, %arg2: memref<8x128xf32, #tpu.memory_space<vmem>>, %arg3: memref<128x128xf32, #tpu.memory_space<vmem>>, %arg4: memref<8x128xf32, #tpu.memory_space<vmem>>, %arg5: memref<8x128xf32, #tpu.memory_space<vmem>>, %arg6: memref<8x128xf32, #tpu.memory_space<vmem>>, %arg7: memref<8x128xf32, #tpu.memory_space<vmem>>) attributes {dimension_semantics = [#tpu.dimension_semantics<parallel>, #tpu.dimension_semantics<arbitrary>], iteration_bounds = array<i64: 1, 3>, scalar_prefetch = 0 : i64, scratch_operands = 2 : i64, tpu.core_type = #tpu.core_type<tc>, window_params = [{transform_indices = @transform_0, window_bounds = array<i64: 8, 128>}, {transform_indices = @transform_1, window_bounds = array<i64: 128, 128>}, {transform_indices = @transform_2, window_bounds = array<i64: 8, 128>}, {transform_indices = @transform_3, window_bounds = array<i64: 8, 128>}]} {
    %c0 = arith.constant 0 : index
    %c0_0 = arith.constant 0 : index
    %0 = vector.load %arg2[%c0, %c0_0] : memref<8x128xf32, #tpu.memory_space<vmem>>, vector<8x128xf32>
    %c0_1 = arith.constant 0 : index
    %c0_2 = arith.constant 0 : index
    %1 = vector.load %arg3[%c0_1, %c0_2] : memref<128x128xf32, #tpu.memory_space<vmem>>, vector<128x128xf32>
    %cst = arith.constant dense<0.000000e+00> : vector<8x128xf32>
    %2 = tpu.matmul %0, %1, %cst {dimension_numbers = #tpu.dot_dimension_numbers<[1], [0], [0], [1], [0, 0, 1, 1], [], []>} : vector<8x128xf32>, vector<128x128xf32>, vector<8x128xf32> -> vector<8x128xf32>
    %c0_3 = arith.constant 0 : index
    %c0_4 = arith.constant 0 : index
    %3 = vector.load %arg6[%c0_3, %c0_4] : memref<8x128xf32, #tpu.memory_space<vmem>>, vector<8x128xf32>
    tpu.vector_store %arg6[%c0_3, %c0_4], %2 {strides = array<i32>} : memref<8x128xf32, #tpu.memory_space<vmem>>, vector<8x128xf32>,
    %c0_5 = arith.constant 0 : index
    %c0_6 = arith.constant 0 : index
    %4 = vector.load %arg4[%c0_5, %c0_6] : memref<8x128xf32, #tpu.memory_space<vmem>>, vector<1x128xf32>
    %c1 = arith.constant 1 : index
    %c0_7 = arith.constant 0 : index
    %5 = vector.load %arg4[%c1, %c0_7] : memref<8x128xf32, #tpu.memory_space<vmem>>, vector<1x128xf32>
    %c2 = arith.constant 2 : index
    %c0_8 = arith.constant 0 : index
    %6 = vector.load %arg4[%c2, %c0_8] : memref<8x128xf32, #tpu.memory_space<vmem>>, vector<1x128xf32>
    %c3 = arith.constant 3 : index
    %c0_9 = arith.constant 0 : index
    %7 = vector.load %arg4[%c3, %c0_9] : memref<8x128xf32, #tpu.memory_space<vmem>>, vector<1x128xf32>
    %c4 = arith.constant 4 : index
    %c0_10 = arith.constant 0 : index
    %8 = vector.load %arg4[%c4, %c0_10] : memref<8x128xf32, #tpu.memory_space<vmem>>, vector<1x128xf32>
    %cst_11 = arith.constant 1.000000e-03 : f32
    %9 = vector.broadcast %cst_11 : f32 to vector<1x128xf32>
    %10 = arith.mulf %9, %8 : vector<1x128xf32>
    %cst_12 = arith.constant 1.000000e+00 : f32
    %11 = vector.broadcast %cst_12 : f32 to vector<1x128xf32>
    %12 = arith.subf %11, %10 : vector<1x128xf32>
    %cst_13 = arith.constant 1.000000e-03 : f32
    %13 = vector.broadcast %cst_13 : f32 to vector<1x128xf32>
    %14 = arith.mulf %13, %8 : vector<1x128xf32>
    %15 = arith.mulf %14, %5 : vector<1x128xf32>
    %cst_14 = arith.constant 0.000000e+00 : f32
    %16 = vector.broadcast %cst_14 : f32 to vector<1x128xf32>
    %cst_15 = arith.constant 1.000000e+00 : f32
    %17 = vector.broadcast %cst_15 : f32 to vector<1x128xf32>
    %c0_i32 = arith.constant 0 : i32
    %18 = arith.cmpi eq, %arg1, %c0_i32 : i32
    %19 = arith.extui %18 : i1 to i32
    %c0_i32_16 = arith.constant 0 : i32
    %20 = arith.cmpi ne, %19, %c0_i32_16 : i32
    scf.if %20 {
      %c0_64 = arith.constant 0 : index
      %c0_65 = arith.constant 0 : index
      %198 = vector.load %arg7[%c0_64, %c0_65] : memref<8x128xf32, #tpu.memory_space<vmem>>, vector<1x128xf32>
      tpu.vector_store %arg7[%c0_64, %c0_65], %5 {strides = array<i32>} : memref<8x128xf32, #tpu.memory_space<vmem>>, vector<1x128xf32>,
      %cst_66 = arith.constant 0.000000e+00 : f32
      %199 = vector.broadcast %cst_66 : f32 to vector<1x128xf32>
      %c1_67 = arith.constant 1 : index
      %c0_68 = arith.constant 0 : index
      %200 = vector.load %arg7[%c1_67, %c0_68] : memref<8x128xf32, #tpu.memory_space<vmem>>, vector<1x128xf32>
      tpu.vector_store %arg7[%c1_67, %c0_68], %199 {strides = array<i32>} : memref<8x128xf32, #tpu.memory_space<vmem>>, vector<1x128xf32>,
    } else {
    }
    %c0_i32_17 = arith.constant 0 : i32
    %21 = arith.cmpi eq, %arg1, %c0_i32_17 : i32
    %22 = arith.extui %21 : i1 to i32
    %23 = arith.sitofp %22 : i32 to f32
    %c0_18 = arith.constant 0 : index
    %c0_19 = arith.constant 0 : index
    %24 = vector.load %arg7[%c0_18, %c0_19] : memref<8x128xf32, #tpu.memory_space<vmem>>, vector<1x128xf32>
    %c1_20 = arith.constant 1 : index
    %c0_21 = arith.constant 0 : index
    %25 = vector.load %arg7[%c1_20, %c0_21] : memref<8x128xf32, #tpu.memory_space<vmem>>, vector<1x128xf32>
    %c0_i32_22 = arith.constant 0 : i32
    %c8_i32 = arith.constant 8 : i32
    %26 = arith.muli %c0_i32_22, %c8_i32 : i32
    %27 = tpu.assume_multiple %26, 8 : i32
    %28 = arith.index_cast %27 : i32 to index
    %c0_23 = arith.constant 0 : index
    %29 = vector.load %arg6[%28, %c0_23] : memref<8x128xf32, #tpu.memory_space<vmem>>, vector<8x128xf32>
    %c0_i32_24 = arith.constant 0 : i32
    %30 = arith.cmpi eq, %c0_i32_22, %c0_i32_24 : i32
    %31 = arith.extui %30 : i1 to i32
    %32 = arith.sitofp %31 : i32 to f32
    %33 = arith.mulf %23, %32 : f32
    %34 = vector.broadcast %33 : f32 to vector<1x128xf32>
    %cst_25 = arith.constant 1.000000e+00 : f32
    %35 = vector.broadcast %cst_25 : f32 to vector<1x128xf32>
    %36 = arith.subf %35, %34 : vector<1x128xf32>
    %37 = vector.extract_strided_slice %29 {offsets = [0, 0], sizes = [1, 128], strides = [1, 1]} : vector<8x128xf32> to vector<1x128xf32>
    %38 = arith.mulf %24, %12 : vector<1x128xf32>
    %39 = arith.addf %38, %15 : vector<1x128xf32>
    %cst_26 = arith.constant 0.000000e+00 : f32
    %40 = vector.broadcast %cst_26 : f32 to vector<1x128xf32>
    %41 = arith.cmpf oeq, %25, %40 : vector<1x128xf32>
    %42 = arith.select %41, %37, %16 : vector<1x128xi1>, vector<1x128xf32>
    %43 = arith.addf %39, %42 : vector<1x128xf32>
    %cst_27 = arith.constant 0.000000e+00 : f32
    %44 = vector.broadcast %cst_27 : f32 to vector<1x128xf32>
    %45 = arith.cmpf ogt, %25, %44 : vector<1x128xf32>
    %cst_28 = arith.constant 1.000000e-03 : f32
    %46 = vector.broadcast %cst_28 : f32 to vector<1x128xf32>
    %47 = arith.subf %25, %46 : vector<1x128xf32>
    %48 = arith.select %45, %47, %16 : vector<1x128xi1>, vector<1x128xf32>
    %49 = arith.cmpf oge, %43, %4 : vector<1x128xf32>
    %50 = arith.select %49, %17, %16 : vector<1x128xi1>, vector<1x128xf32>
    %51 = arith.select %49, %7, %48 : vector<1x128xi1>, vector<1x128xf32>
    %52 = arith.select %49, %6, %43 : vector<1x128xi1>, vector<1x128xf32>
    %53 = arith.mulf %50, %36 : vector<1x128xf32>
    %54 = arith.mulf %52, %36 : vector<1x128xf32>
    %55 = arith.mulf %24, %34 : vector<1x128xf32>
    %56 = arith.addf %54, %55 : vector<1x128xf32>
    %57 = arith.mulf %51, %36 : vector<1x128xf32>
    %58 = arith.mulf %25, %34 : vector<1x128xf32>
    %59 = arith.addf %57, %58 : vector<1x128xf32>
    %c0_i32_29 = arith.constant 0 : i32
    %60 = arith.addi %27, %c0_i32_29 : i32
    %61 = arith.index_cast %60 : i32 to index
    %c0_30 = arith.constant 0 : index
    %62 = vector.load %arg5[%61, %c0_30] : memref<8x128xf32, #tpu.memory_space<vmem>>, vector<1x128xf32>
    tpu.vector_store %arg5[%61, %c0_30], %53 {strides = array<i32>} : memref<8x128xf32, #tpu.memory_space<vmem>>, vector<1x128xf32>,
    %63 = vector.extract_strided_slice %29 {offsets = [1, 0], sizes = [1, 128], strides = [1, 1]} : vector<8x128xf32> to vector<1x128xf32>
    %64 = arith.mulf %56, %12 : vector<1x128xf32>
    %65 = arith.addf %64, %15 : vector<1x128xf32>
    %cst_31 = arith.constant 0.000000e+00 : f32
    %66 = vector.broadcast %cst_31 : f32 to vector<1x128xf32>
    %67 = arith.cmpf oeq, %59, %66 : vector<1x128xf32>
    %68 = arith.select %67, %63, %16 : vector<1x128xi1>, vector<1x128xf32>
    %69 = arith.addf %65, %68 : vector<1x128xf32>
    %cst_32 = arith.constant 0.000000e+00 : f32
    %70 = vector.broadcast %cst_32 : f32 to vector<1x128xf32>
    %71 = arith.cmpf ogt, %59, %70 : vector<1x128xf32>
    %cst_33 = arith.constant 1.000000e-03 : f32
    %72 = vector.broadcast %cst_33 : f32 to vector<1x128xf32>
    %73 = arith.subf %59, %72 : vector<1x128xf32>
    %74 = arith.select %71, %73, %16 : vector<1x128xi1>, vector<1x128xf32>
    %75 = arith.cmpf oge, %69, %4 : vector<1x128xf32>
    %76 = arith.select %75, %17, %16 : vector<1x128xi1>, vector<1x128xf32>
    %77 = arith.select %75, %7, %74 : vector<1x128xi1>, vector<1x128xf32>
    %78 = arith.select %75, %6, %69 : vector<1x128xi1>, vector<1x128xf32>
    %c1_i32 = arith.constant 1 : i32
    %79 = arith.addi %27, %c1_i32 : i32
    %80 = arith.index_cast %79 : i32 to index
    %c0_34 = arith.constant 0 : index
    %81 = vector.load %arg5[%80, %c0_34] : memref<8x128xf32, #tpu.memory_space<vmem>>, vector<1x128xf32>
    tpu.vector_store %arg5[%80, %c0_34], %76 {strides = array<i32>} : memref<8x128xf32, #tpu.memory_space<vmem>>, vector<1x128xf32>,
    %82 = vector.extract_strided_slice %29 {offsets = [2, 0], sizes = [1, 128], strides = [1, 1]} : vector<8x128xf32> to vector<1x128xf32>
    %83 = arith.mulf %78, %12 : vector<1x128xf32>
    %84 = arith.addf %83, %15 : vector<1x128xf32>
    %cst_35 = arith.constant 0.000000e+00 : f32
    %85 = vector.broadcast %cst_35 : f32 to vector<1x128xf32>
    %86 = arith.cmpf oeq, %77, %85 : vector<1x128xf32>
    %87 = arith.select %86, %82, %16 : vector<1x128xi1>, vector<1x128xf32>
    %88 = arith.addf %84, %87 : vector<1x128xf32>
    %cst_36 = arith.constant 0.000000e+00 : f32
    %89 = vector.broadcast %cst_36 : f32 to vector<1x128xf32>
    %90 = arith.cmpf ogt, %77, %89 : vector<1x128xf32>
    %cst_37 = arith.constant 1.000000e-03 : f32
    %91 = vector.broadcast %cst_37 : f32 to vector<1x128xf32>
    %92 = arith.subf %77, %91 : vector<1x128xf32>
    %93 = arith.select %90, %92, %16 : vector<1x128xi1>, vector<1x128xf32>
    %94 = arith.cmpf oge, %88, %4 : vector<1x128xf32>
    %95 = arith.select %94, %17, %16 : vector<1x128xi1>, vector<1x128xf32>
    %96 = arith.select %94, %7, %93 : vector<1x128xi1>, vector<1x128xf32>
    %97 = arith.select %94, %6, %88 : vector<1x128xi1>, vector<1x128xf32>
    %c2_i32 = arith.constant 2 : i32
    %98 = arith.addi %27, %c2_i32 : i32
    %99 = arith.index_cast %98 : i32 to index
    %c0_38 = arith.constant 0 : index
    %100 = vector.load %arg5[%99, %c0_38] : memref<8x128xf32, #tpu.memory_space<vmem>>, vector<1x128xf32>
    tpu.vector_store %arg5[%99, %c0_38], %95 {strides = array<i32>} : memref<8x128xf32, #tpu.memory_space<vmem>>, vector<1x128xf32>,
    %101 = vector.extract_strided_slice %29 {offsets = [3, 0], sizes = [1, 128], strides = [1, 1]} : vector<8x128xf32> to vector<1x128xf32>
    %102 = arith.mulf %97, %12 : vector<1x128xf32>
    %103 = arith.addf %102, %15 : vector<1x128xf32>
    %cst_39 = arith.constant 0.000000e+00 : f32
    %104 = vector.broadcast %cst_39 : f32 to vector<1x128xf32>
    %105 = arith.cmpf oeq, %96, %104 : vector<1x128xf32>
    %106 = arith.select %105, %101, %16 : vector<1x128xi1>, vector<1x128xf32>
    %107 = arith.addf %103, %106 : vector<1x128xf32>
    %cst_40 = arith.constant 0.000000e+00 : f32
    %108 = vector.broadcast %cst_40 : f32 to vector<1x128xf32>
    %109 = arith.cmpf ogt, %96, %108 : vector<1x128xf32>
    %cst_41 = arith.constant 1.000000e-03 : f32
    %110 = vector.broadcast %cst_41 : f32 to vector<1x128xf32>
    %111 = arith.subf %96, %110 : vector<1x128xf32>
    %112 = arith.select %109, %111, %16 : vector<1x128xi1>, vector<1x128xf32>
    %113 = arith.cmpf oge, %107, %4 : vector<1x128xf32>
    %114 = arith.select %113, %17, %16 : vector<1x128xi1>, vector<1x128xf32>
    %115 = arith.select %113, %7, %112 : vector<1x128xi1>, vector<1x128xf32>
    %116 = arith.select %113, %6, %107 : vector<1x128xi1>, vector<1x128xf32>
    %c3_i32 = arith.constant 3 : i32
    %117 = arith.addi %27, %c3_i32 : i32
    %118 = arith.index_cast %117 : i32 to index
    %c0_42 = arith.constant 0 : index
    %119 = vector.load %arg5[%118, %c0_42] : memref<8x128xf32, #tpu.memory_space<vmem>>, vector<1x128xf32>
    tpu.vector_store %arg5[%118, %c0_42], %114 {strides = array<i32>} : memref<8x128xf32, #tpu.memory_space<vmem>>, vector<1x128xf32>,
    %120 = vector.extract_strided_slice %29 {offsets = [4, 0], sizes = [1, 128], strides = [1, 1]} : vector<8x128xf32> to vector<1x128xf32>
    %121 = arith.mulf %116, %12 : vector<1x128xf32>
    %122 = arith.addf %121, %15 : vector<1x128xf32>
    %cst_43 = arith.constant 0.000000e+00 : f32
    %123 = vector.broadcast %cst_43 : f32 to vector<1x128xf32>
    %124 = arith.cmpf oeq, %115, %123 : vector<1x128xf32>
    %125 = arith.select %124, %120, %16 : vector<1x128xi1>, vector<1x128xf32>
    %126 = arith.addf %122, %125 : vector<1x128xf32>
    %cst_44 = arith.constant 0.000000e+00 : f32
    %127 = vector.broadcast %cst_44 : f32 to vector<1x128xf32>
    %128 = arith.cmpf ogt, %115, %127 : vector<1x128xf32>
    %cst_45 = arith.constant 1.000000e-03 : f32
    %129 = vector.broadcast %cst_45 : f32 to vector<1x128xf32>
    %130 = arith.subf %115, %129 : vector<1x128xf32>
    %131 = arith.select %128, %130, %16 : vector<1x128xi1>, vector<1x128xf32>
    %132 = arith.cmpf oge, %126, %4 : vector<1x128xf32>
    %133 = arith.select %132, %17, %16 : vector<1x128xi1>, vector<1x128xf32>
    %134 = arith.select %132, %7, %131 : vector<1x128xi1>, vector<1x128xf32>
    %135 = arith.select %132, %6, %126 : vector<1x128xi1>, vector<1x128xf32>
    %c4_i32 = arith.constant 4 : i32
    %136 = arith.addi %27, %c4_i32 : i32
    %137 = arith.index_cast %136 : i32 to index
    %c0_46 = arith.constant 0 : index
    %138 = vector.load %arg5[%137, %c0_46] : memref<8x128xf32, #tpu.memory_space<vmem>>, vector<1x128xf32>
    tpu.vector_store %arg5[%137, %c0_46], %133 {strides = array<i32>} : memref<8x128xf32, #tpu.memory_space<vmem>>, vector<1x128xf32>,
    %139 = vector.extract_strided_slice %29 {offsets = [5, 0], sizes = [1, 128], strides = [1, 1]} : vector<8x128xf32> to vector<1x128xf32>
    %140 = arith.mulf %135, %12 : vector<1x128xf32>
    %141 = arith.addf %140, %15 : vector<1x128xf32>
    %cst_47 = arith.constant 0.000000e+00 : f32
    %142 = vector.broadcast %cst_47 : f32 to vector<1x128xf32>
    %143 = arith.cmpf oeq, %134, %142 : vector<1x128xf32>
    %144 = arith.select %143, %139, %16 : vector<1x128xi1>, vector<1x128xf32>
    %145 = arith.addf %141, %144 : vector<1x128xf32>
    %cst_48 = arith.constant 0.000000e+00 : f32
    %146 = vector.broadcast %cst_48 : f32 to vector<1x128xf32>
    %147 = arith.cmpf ogt, %134, %146 : vector<1x128xf32>
    %cst_49 = arith.constant 1.000000e-03 : f32
    %148 = vector.broadcast %cst_49 : f32 to vector<1x128xf32>
    %149 = arith.subf %134, %148 : vector<1x128xf32>
    %150 = arith.select %147, %149, %16 : vector<1x128xi1>, vector<1x128xf32>
    %151 = arith.cmpf oge, %145, %4 : vector<1x128xf32>
    %152 = arith.select %151, %17, %16 : vector<1x128xi1>, vector<1x128xf32>
    %153 = arith.select %151, %7, %150 : vector<1x128xi1>, vector<1x128xf32>
    %154 = arith.select %151, %6, %145 : vector<1x128xi1>, vector<1x128xf32>
    %c5_i32 = arith.constant 5 : i32
    %155 = arith.addi %27, %c5_i32 : i32
    %156 = arith.index_cast %155 : i32 to index
    %c0_50 = arith.constant 0 : index
    %157 = vector.load %arg5[%156, %c0_50] : memref<8x128xf32, #tpu.memory_space<vmem>>, vector<1x128xf32>
    tpu.vector_store %arg5[%156, %c0_50], %152 {strides = array<i32>} : memref<8x128xf32, #tpu.memory_space<vmem>>, vector<1x128xf32>,
    %158 = vector.extract_strided_slice %29 {offsets = [6, 0], sizes = [1, 128], strides = [1, 1]} : vector<8x128xf32> to vector<1x128xf32>
    %159 = arith.mulf %154, %12 : vector<1x128xf32>
    %160 = arith.addf %159, %15 : vector<1x128xf32>
    %cst_51 = arith.constant 0.000000e+00 : f32
    %161 = vector.broadcast %cst_51 : f32 to vector<1x128xf32>
    %162 = arith.cmpf oeq, %153, %161 : vector<1x128xf32>
    %163 = arith.select %162, %158, %16 : vector<1x128xi1>, vector<1x128xf32>
    %164 = arith.addf %160, %163 : vector<1x128xf32>
    %cst_52 = arith.constant 0.000000e+00 : f32
    %165 = vector.broadcast %cst_52 : f32 to vector<1x128xf32>
    %166 = arith.cmpf ogt, %153, %165 : vector<1x128xf32>
    %cst_53 = arith.constant 1.000000e-03 : f32
    %167 = vector.broadcast %cst_53 : f32 to vector<1x128xf32>
    %168 = arith.subf %153, %167 : vector<1x128xf32>
    %169 = arith.select %166, %168, %16 : vector<1x128xi1>, vector<1x128xf32>
    %170 = arith.cmpf oge, %164, %4 : vector<1x128xf32>
    %171 = arith.select %170, %17, %16 : vector<1x128xi1>, vector<1x128xf32>
    %172 = arith.select %170, %7, %169 : vector<1x128xi1>, vector<1x128xf32>
    %173 = arith.select %170, %6, %164 : vector<1x128xi1>, vector<1x128xf32>
    %c6_i32 = arith.constant 6 : i32
    %174 = arith.addi %27, %c6_i32 : i32
    %175 = arith.index_cast %174 : i32 to index
    %c0_54 = arith.constant 0 : index
    %176 = vector.load %arg5[%175, %c0_54] : memref<8x128xf32, #tpu.memory_space<vmem>>, vector<1x128xf32>
    tpu.vector_store %arg5[%175, %c0_54], %171 {strides = array<i32>} : memref<8x128xf32, #tpu.memory_space<vmem>>, vector<1x128xf32>,
    %177 = vector.extract_strided_slice %29 {offsets = [7, 0], sizes = [1, 128], strides = [1, 1]} : vector<8x128xf32> to vector<1x128xf32>
    %178 = arith.mulf %173, %12 : vector<1x128xf32>
    %179 = arith.addf %178, %15 : vector<1x128xf32>
    %cst_55 = arith.constant 0.000000e+00 : f32
    %180 = vector.broadcast %cst_55 : f32 to vector<1x128xf32>
    %181 = arith.cmpf oeq, %172, %180 : vector<1x128xf32>
    %182 = arith.select %181, %177, %16 : vector<1x128xi1>, vector<1x128xf32>
    %183 = arith.addf %179, %182 : vector<1x128xf32>
    %cst_56 = arith.constant 0.000000e+00 : f32
    %184 = vector.broadcast %cst_56 : f32 to vector<1x128xf32>
    %185 = arith.cmpf ogt, %172, %184 : vector<1x128xf32>
    %cst_57 = arith.constant 1.000000e-03 : f32
    %186 = vector.broadcast %cst_57 : f32 to vector<1x128xf32>
    %187 = arith.subf %172, %186 : vector<1x128xf32>
    %188 = arith.select %185, %187, %16 : vector<1x128xi1>, vector<1x128xf32>
    %189 = arith.cmpf oge, %183, %4 : vector<1x128xf32>
    %190 = arith.select %189, %17, %16 : vector<1x128xi1>, vector<1x128xf32>
    %191 = arith.select %189, %7, %188 : vector<1x128xi1>, vector<1x128xf32>
    %192 = arith.select %189, %6, %183 : vector<1x128xi1>, vector<1x128xf32>
    %c7_i32 = arith.constant 7 : i32
    %193 = arith.addi %27, %c7_i32 : i32
    %194 = arith.index_cast %193 : i32 to index
    %c0_58 = arith.constant 0 : index
    %195 = vector.load %arg5[%194, %c0_58] : memref<8x128xf32, #tpu.memory_space<vmem>>, vector<1x128xf32>
    tpu.vector_store %arg5[%194, %c0_58], %190 {strides = array<i32>} : memref<8x128xf32, #tpu.memory_space<vmem>>, vector<1x128xf32>,
    %c1_i32_59 = arith.constant 1 : i32
    %c0_60 = arith.constant 0 : index
    %c0_61 = arith.constant 0 : index
    %196 = vector.load %arg7[%c0_60, %c0_61] : memref<8x128xf32, #tpu.memory_space<vmem>>, vector<1x128xf32>
    tpu.vector_store %arg7[%c0_60, %c0_61], %192 {strides = array<i32>} : memref<8x128xf32, #tpu.memory_space<vmem>>, vector<1x128xf32>,
    %c1_62 = arith.constant 1 : index
    %c0_63 = arith.constant 0 : index
    %197 = vector.load %arg7[%c1_62, %c0_63] : memref<8x128xf32, #tpu.memory_space<vmem>>, vector<1x128xf32>
    tpu.vector_store %arg7[%c1_62, %c0_63], %191 {strides = array<i32>} : memref<8x128xf32, #tpu.memory_space<vmem>>, vector<1x128xf32>,
    return
  }
  func.func @transform_0(%arg0: i32, %arg1: i32) -> (i32, i32) {
    %c0_i32 = arith.constant 0 : i32
    %c0_i32_0 = arith.constant 0 : i32
    return %arg1, %c0_i32 : i32, i32
  }
  func.func @transform_1(%arg0: i32, %arg1: i32) -> (i32, i32) {
    %c0_i32 = arith.constant 0 : i32
    %c0_i32_0 = arith.constant 0 : i32
    return %c0_i32, %arg0 : i32, i32
  }
  func.func @transform_2(%arg0: i32, %arg1: i32) -> (i32, i32) {
    %c0_i32 = arith.constant 0 : i32
    %c0_i32_0 = arith.constant 0 : i32
    return %c0_i32, %arg0 : i32, i32
  }
  func.func @transform_3(%arg0: i32, %arg1: i32) -> (i32, i32) {
    %c0_i32 = arith.constant 0 : i32
    return %arg1, %arg0 : i32, i32
  }
}

</mosaic_0001>

<llo_original>
// kernel: tpu_custom_call.1
$region0: #{tpu_custom_call.1}
  #allocation0 [shape = 'u32[]', space=smem, size = 0x4, offset = 0x4, fixed_abs, tag = 'smem constant byte address 0x4 - core index']
  #allocation1 [shape = 'u32[144,128]{1,0:T(1,128)}', space=vmem, size = 0x12000, scoped, tag = 'internal scratch']
  #allocation2 [shape = 'f32[8,128]{1,0:T(8,128)}', space=vmem, size = 0x1000, scoped, tag = 'scratch operand']
  #allocation3 [shape = 'f32[8,128]{1,0:T(8,128)}', space=vmem, size = 0x1000, scoped, tag = 'scratch operand']
  %s0 = inlined_call_operand.hbm [shape: f32[24,128], index: 0, kind: input, shape index: {}]
  %s1 = inlined_call_operand.hbm [shape: f32[128,128], index: 1, kind: input, shape index: {}]
  %s2 = inlined_call_operand.hbm [shape: f32[8,128], index: 2, kind: input, shape index: {}]
  %s3 = inlined_call_operand.hbm [shape: f32[24,128], index: 3, kind: output, shape index: {}]
  %s4 = sld [smem:[#allocation0]]
  $region61: #{tpu_custom_call.1} parent=0
    _
  %s6 = ssub.s32 1, %s4
  %s7 = scalar_select 0, %s6, %s4
  $region1: #{tpu_custom_call.1} parent=0
    #allocation4 [shape = 'u8[8192]{0}', space=vmem, size = 0x2000, scoped, tag = 'input window, operand 0']
    #allocation5 [shape = 's32[2]{0}', space=sflag, size = 0x8, scoped, tag = 'scoped memory for tpu_custom_call.1']
    #allocation6 [shape = 's32[2]{0}', space=sflag, size = 0x8, scoped, tag = 'scoped memory for tpu_custom_call.1']
    #allocation7 [shape = 'u8[65536]{0}', space=vmem, size = 0x10000, scoped, tag = 'input window, operand 1, single buffered']
    #allocation8 [shape = 's32[1]{0}', space=sflag, size = 0x4, scoped, tag = 'scoped memory for tpu_custom_call.1']
    #allocation9 [shape = 'u8[4096]{0}', space=vmem, size = 0x1000, scoped, tag = 'input window, operand 2, single buffered']
    #allocation10 [shape = 'u8[8192]{0}', space=vmem, size = 0x2000, scoped, tag = 'output window, operand 0']
    %8 = vsyncpa [#allocation5], 0
    %s9 = scalar_lea.sflag [#allocation5], 1
    %10 = vsyncpa %s9, 0
    %11 = vsyncpa [#allocation8], 0
    %12 = vsyncpa [#allocation6], 0
    %s13 = scalar_lea.sflag [#allocation6], 1
    %14 = vsyncpa %s13, 0
    loop: start=0, step=1, limit=5
    $region2: #{tpu_custom_call.1} parent=1 // loop_pre_header
      _
    $region3: #{tpu_custom_call.1} parent=1 // loop_header
      %s16 = sphi 0, %s20
      %p17 = scmp.ge.s32.totalorder %s16, 5
      %s23 = sphi 0, %s35
      %s24 = sphi 0, %s31
      %s25 = sphi 0, %s23
      %s26 = sphi 0, %s24
      %s27 = sphi 0, %s25
      %s28 = sphi 0, %s26
      %s38 = sphi 0, %s40
      %s41 = sphi 0, %s38
      %s42 = sphi 0, %s41
      %s58 = sphi 0, %s42
      %s64 = sphi 0, %s66
      %s67 = sphi 0, %s64
      %s68 = sphi 0, %s67
      %s84 = sphi 0, %s68
      %s90 = sphi 0, %s92
      %s93 = sphi 0, %s90
      %s94 = sphi 0, %s93
      %s110 = sphi 0, %s94
      %s118 = sphi 0, %s120
      %s121 = sphi 0, %s118
      %s122 = sphi 0, %s121
      %s138 = sphi 0, %s122
    $region4: #{tpu_custom_call.1} parent=1 // loop_header_branch
      %19 = sbr.rel (%p17) target = $region8
    $region5: #{tpu_custom_call.1} parent=1 // loop_body
      %s21 = ssub.s32 %s16, 1
      %s22 = ssub.s32 %s16, 2
      %s29 = sadd.s32 1, %s24
      %p30 = scmp.ge.s32.totalorder %s29, 3
      %s31 = scalar_select %p30, 0, %s29
      %s32 = sadd.s32 1, %s23
      %s33 = scalar_select %p30, %s32, %s23
      %p34 = scmp.ge.s32.totalorder %s33, 1
      %s35 = scalar_select %p34, 0, %s33
      %s36 = ssub.s32 %s24, %s31
      %p37 = scmp.eq.s32.totalorder %s36, 0
      %s39 = sadd.s32 %s38, 1
      %s40 = scalar_select %p37, %s38, %s39
      %p43 = pneg %p37
      %p44 = scmp.eq.s32.totalorder %s16, 2
      %p45 = por %p43, %p44
      %p46 = scmp.ne.s32.totalorder %s38, %s41
      %p47 = scmp.eq.s32.totalorder %s16, 0
      %p48 = por %p46, %p47
      %p49 = scmp.ne.s32.totalorder %s38, %s41
      %p50 = scmp.eq.s32.totalorder %s21, 2
      %p51 = por %p49, %p50
      %p52 = scmp.ne.s32.totalorder %s41, %s42
      %p53 = scmp.eq.s32.totalorder %s21, 0
      %p54 = por %p52, %p53
      %p55 = scmp.ne.s32.totalorder %s41, %s42
      %p56 = scmp.eq.s32.totalorder %s22, 2
      %p57 = por %p55, %p56
      %p59 = scmp.ne.s32.totalorder %s42, %s58
      %p60 = scmp.eq.s32.totalorder %s22, 0
      %p61 = por %p59, %p60
      %s62 = ssub.s32 %s23, %s35
      %p63 = scmp.eq.s32.totalorder %s62, 0
      %s65 = sadd.s32 %s64, 1
      %s66 = scalar_select %p63, %s64, %s65
      %p69 = pneg %p63
      %p70 = scmp.eq.s32.totalorder %s16, 2
      %p71 = por %p69, %p70
      %p72 = scmp.ne.s32.totalorder %s64, %s67
      %p73 = scmp.eq.s32.totalorder %s16, 0
      %p74 = por %p72, %p73
      %p75 = scmp.ne.s32.totalorder %s64, %s67
      %p76 = scmp.eq.s32.totalorder %s21, 2
      %p77 = por %p75, %p76
      %p78 = scmp.ne.s32.totalorder %s67, %s68
      %p79 = scmp.eq.s32.totalorder %s21, 0
      %p80 = por %p78, %p79
      %p81 = scmp.ne.s32.totalorder %s67, %s68
      %p82 = scmp.eq.s32.totalorder %s22, 2
      %p83 = por %p81, %p82
      %p85 = scmp.ne.s32.totalorder %s68, %s84
      %p86 = scmp.eq.s32.totalorder %s22, 0
      %p87 = por %p85, %p86
      %s88 = ssub.s32 %s23, %s35
      %p89 = scmp.eq.s32.totalorder %s88, 0
      %s91 = sadd.s32 %s90, 1
      %s92 = scalar_select %p89, %s90, %s91
      %p95 = pneg %p89
      %p96 = scmp.eq.s32.totalorder %s16, 2
      %p97 = por %p95, %p96
      %p98 = scmp.ne.s32.totalorder %s90, %s93
      %p99 = scmp.eq.s32.totalorder %s16, 0
      %p100 = por %p98, %p99
      %p101 = scmp.ne.s32.totalorder %s90, %s93
      %p102 = scmp.eq.s32.totalorder %s21, 2
      %p103 = por %p101, %p102
      %p104 = scmp.ne.s32.totalorder %s93, %s94
      %p105 = scmp.eq.s32.totalorder %s21, 0
      %p106 = por %p104, %p105
      %p107 = scmp.ne.s32.totalorder %s93, %s94
      %p108 = scmp.eq.s32.totalorder %s22, 2
      %p109 = por %p107, %p108
      %p111 = scmp.ne.s32.totalorder %s94, %s110
      %p112 = scmp.eq.s32.totalorder %s22, 0
      %p113 = por %p111, %p112
      %s114 = ssub.s32 %s24, %s31
      %s115 = ssub.s32 %s23, %s35
      %s116 = sor.u32 %s114, %s115
      %p117 = scmp.eq.s32.totalorder %s116, 0
      %s119 = sadd.s32 %s118, 1
      %s120 = scalar_select %p117, %s118, %s119
      %p123 = pneg %p117
      %p124 = scmp.eq.s32.totalorder %s16, 2
      %p125 = por %p123, %p124
      %p126 = scmp.ne.s32.totalorder %s118, %s121
      %p127 = scmp.eq.s32.totalorder %s16, 0
      %p128 = por %p126, %p127
      %p129 = scmp.ne.s32.totalorder %s118, %s121
      %p130 = scmp.eq.s32.totalorder %s21, 2
      %p131 = por %p129, %p130
      %p132 = scmp.ne.s32.totalorder %s121, %s122
      %p133 = scmp.eq.s32.totalorder %s21, 0
      %p134 = por %p132, %p133
      %p135 = scmp.ne.s32.totalorder %s121, %s122
      %p136 = scmp.eq.s32.totalorder %s22, 2
      %p137 = por %p135, %p136
      %p139 = scmp.ne.s32.totalorder %s122, %s138
      %p140 = scmp.eq.s32.totalorder %s22, 0
      %p141 = por %p139, %p140
      %p142 = scmp.le.s32.totalorder 1, %s16
      %p143 = scmp.lt.s32.totalorder %s16, 4
      %p144 = pnand %p142, %p143
      %p145 = pneg %p144
      // Predicated region
      $region9: #{tpu_custom_call.1} parent=5 // pred_check
        _
      $region10: #{tpu_custom_call.1} parent=5 // pred_check_branch
        %147 = sbr.rel (%p144) target = $region12
      $region11: #{tpu_custom_call.1} parent=5 // pred_region
        %s148 = ssub.s32 %s16, 1
        // Predicated region
        $region13: #{tpu_custom_call.1} parent=11 // pred_check
          %p149 = pneg %p80
        $region14: #{tpu_custom_call.1} parent=11 // pred_check_branch
          %151 = sbr.rel (%p149) target = $region16
        $region15: #{tpu_custom_call.1} parent=11 // pred_region
          %s153 = ssub.s32 2048, 2048
          %154 = vsyncadd [#allocation8], %s153
          %s155 = smul.addr %s25, 128
          %s156 = scalar_lea.hbm %s1, %s155
          %s157 = sshll.u32 [#allocation7], 4
          %s158 = int_to_ptr.vmem [resolvable:$true] %s157
          %163 = dma.hbm_to_vmem [thread:$0]  %s156, 2048, %s158, [#allocation8], 128, 128, 8
        $region16: #{tpu_custom_call.1} parent=11 // pred_fallthru
          _
        // Predicated region
        $region17: #{tpu_custom_call.1} parent=11 // pred_check
          %p164 = pneg %p106
        $region18: #{tpu_custom_call.1} parent=11 // pred_check_branch
          %166 = sbr.rel (%p164) target = $region20
        $region19: #{tpu_custom_call.1} parent=11 // pred_region
          %s168 = ssub.s32 128, 128
          %169 = vsyncadd [#allocation8], %s168
          %s170 = smul.addr %s25, 128
          %s171 = scalar_lea.hbm %s2, %s170
          %s173 = sshll.u32 [#allocation9], 4
          %s174 = int_to_ptr.vmem [resolvable:$true] %s173
          %176 = dma.hbm_to_vmem [thread:$0]  %s171, 128, %s174, [#allocation8]
        $region20: #{tpu_custom_call.1} parent=11 // pred_fallthru
          _
      $region12: #{tpu_custom_call.1} parent=5 // pred_fallthru
        _
      %p177 = scmp.lt.s32.totalorder %s16, 3
      // Predicated region
      $region21: #{tpu_custom_call.1} parent=5 // pred_check
        %p178 = pneg %p177
      $region22: #{tpu_custom_call.1} parent=5 // pred_check_branch
        %180 = sbr.rel (%p178) target = $region24
      $region23: #{tpu_custom_call.1} parent=5 // pred_region
        // Predicated region
        $region25: #{tpu_custom_call.1} parent=23 // pred_check
          %p181 = pneg %p48
        $region26: #{tpu_custom_call.1} parent=23 // pred_check_branch
          %183 = sbr.rel (%p181) target = $region28
        $region27: #{tpu_custom_call.1} parent=23 // pred_region
          %s184 = sand.u32 %s38, 1
          %s185 = scalar_lea.sflag [#allocation5], %s184
          %s186 = sand.u32 %s38, 1
          %s187 = smul.addr %s186, 8
          %s188 = scalar_lea.vmem [#allocation4], %s187
          %s190 = ssub.s32 128, 128
          %191 = vsyncadd %s185, %s190
          %s192 = smul.addr %s24, 128
          %s193 = scalar_lea.hbm %s0, %s192
          %s195 = sshll.u32 %s188, 4
          %s196 = int_to_ptr.vmem [resolvable:$true] %s195
          %198 = dma.hbm_to_vmem [thread:$0]  %s193, 128, %s196, %s185
        $region28: #{tpu_custom_call.1} parent=23 // pred_fallthru
          _
      $region24: #{tpu_custom_call.1} parent=5 // pred_fallthru
        _
      %p199 = scmp.le.s32.totalorder 1, %s16
      %p200 = scmp.lt.s32.totalorder %s16, 4
      %p201 = pnand %p199, %p200
      %p202 = pneg %p201
      // Predicated region
      $region29: #{tpu_custom_call.1} parent=5 // pred_check
        _
      $region30: #{tpu_custom_call.1} parent=5 // pred_check_branch
        %204 = sbr.rel (%p201) target = $region32
      $region31: #{tpu_custom_call.1} parent=5 // pred_region
        %s205 = ssub.s32 %s16, 1
        %s206 = sand.u32 %s41, 1
        %s207 = scalar_lea.sflag [#allocation5], %s206
        %s208 = sand.u32 %s41, 1
        %s209 = smul.addr %s208, 8
        %s210 = scalar_lea.vmem [#allocation4], %s209
        // Predicated region
        $region33: #{tpu_custom_call.1} parent=31 // pred_check
          %p211 = pneg %p54
        $region34: #{tpu_custom_call.1} parent=31 // pred_check_branch
          %213 = sbr.rel (%p211) target = $region36
        $region35: #{tpu_custom_call.1} parent=31 // pred_region
          %214 = dma.done %s207, 128
        $region36: #{tpu_custom_call.1} parent=31 // pred_fallthru
          _
        // Predicated region
        $region37: #{tpu_custom_call.1} parent=31 // pred_check
          %p215 = pneg %p80
        $region38: #{tpu_custom_call.1} parent=31 // pred_check_branch
          %217 = sbr.rel (%p215) target = $region40
        $region39: #{tpu_custom_call.1} parent=31 // pred_region
          %218 = dma.done [#allocation8], 2048
        $region40: #{tpu_custom_call.1} parent=31 // pred_fallthru
          _
        // Predicated region
        $region41: #{tpu_custom_call.1} parent=31 // pred_check
          %p219 = pneg %p106
        $region42: #{tpu_custom_call.1} parent=31 // pred_check_branch
          %221 = sbr.rel (%p219) target = $region44
        $region43: #{tpu_custom_call.1} parent=31 // pred_region
          %222 = dma.done [#allocation8], 128
        $region44: #{tpu_custom_call.1} parent=31 // pred_fallthru
          _
        %s223 = sand.u32 %s41, 1
        %s224 = scalar_lea.sflag [#allocation5], %s223
        %s225 = sand.u32 %s41, 1
        %s226 = smul.addr %s225, 8
        %s227 = scalar_lea.vmem [#allocation4], %s226
        %p228 = pneg %p54
        %p229 = pneg %p51
        %p230 = pneg %p80
        %p231 = pneg %p77
        %p232 = pneg %p106
        %p233 = pneg %p103
        %p234 = pneg %p134
        %p235 = pneg %p131
        %s236 = sand.u32 %s121, 1
        %s237 = scalar_lea.sflag [#allocation6], %s236
        %s238 = sand.u32 %s121, 1
        %s239 = smul.addr %s238, 8
        %s240 = scalar_lea.vmem [#allocation10], %s239
        %v241 = vld [vmem:[%s210] sm:$0xff]
        %v242 = vld [vmem:[#allocation7] sm:$0xff]
        %v243 = vld [vmem:[#allocation7 + $0x8] sm:$0xff]
        %v244 = vld [vmem:[#allocation7 + $0x10] sm:$0xff]
        %v245 = vld [vmem:[#allocation7 + $0x18] sm:$0xff]
        %v246 = vld [vmem:[#allocation7 + $0x20] sm:$0xff]
        %v247 = vld [vmem:[#allocation7 + $0x28] sm:$0xff]
        %v248 = vld [vmem:[#allocation7 + $0x30] sm:$0xff]
        %v249 = vld [vmem:[#allocation7 + $0x38] sm:$0xff]
        %v250 = vld [vmem:[#allocation7 + $0x40] sm:$0xff]
        %v251 = vld [vmem:[#allocation7 + $0x48] sm:$0xff]
        %v252 = vld [vmem:[#allocation7 + $0x50] sm:$0xff]
        %v253 = vld [vmem:[#allocation7 + $0x58] sm:$0xff]
        %v254 = vld [vmem:[#allocation7 + $0x60] sm:$0xff]
        %v255 = vld [vmem:[#allocation7 + $0x68] sm:$0xff]
        %v256 = vld [vmem:[#allocation7 + $0x70] sm:$0xff]
        %v257 = vld [vmem:[#allocation7 + $0x78] sm:$0xff]
        %258 = vmatprep.subr.mxu0 0.0
        %259 = vmatpush1.msra.mxu0 %v257
        %260 = vmatprep.subr.mxu0 0.0
        %261 = vmatpush1.msra.mxu0 %v256
        %262 = vmatprep.subr.mxu0 0.0
        %263 = vmatpush1.msra.mxu0 %v255
        %264 = vmatprep.subr.mxu0 0.0
        %265 = vmatpush1.msra.mxu0 %v254
        %266 = vmatprep.subr.mxu0 0.0
        %267 = vmatpush1.msra.mxu0 %v253
        %268 = vmatprep.subr.mxu0 0.0
        %269 = vmatpush1.msra.mxu0 %v252
        %270 = vmatprep.subr.mxu0 0.0
        %271 = vmatpush1.msra.mxu0 %v251
        %272 = vmatprep.subr.mxu0 0.0
        %273 = vmatpush1.msra.mxu0 %v250
        %274 = vmatprep.subr.mxu0 0.0
        %275 = vmatpush1.msra.mxu0 %v249
        %276 = vmatprep.subr.mxu0 0.0
        %277 = vmatpush1.msra.mxu0 %v248
        %278 = vmatprep.subr.mxu0 0.0
        %279 = vmatpush1.msra.mxu0 %v247
        %280 = vmatprep.subr.mxu0 0.0
        %281 = vmatpush1.msra.mxu0 %v246
        %282 = vmatprep.subr.mxu0 0.0
        %283 = vmatpush1.msra.mxu0 %v245
        %284 = vmatprep.subr.mxu0 0.0
        %285 = vmatpush1.msra.mxu0 %v244
        %286 = vmatprep.subr.mxu0 0.0
        %287 = vmatpush1.msra.mxu0 %v243
        %288 = vmatprep.subr.mxu0 0.0
        %289 = vmatpush1.msra.mxu0 %v242
        %290 = vmatprep.subr.mxu0 0.0
        %291 = vmatpush2.msra.mxu0 0.0
        %292 = vmatprep.subr.mxu0 0.0
        %293 = vmatpush2.msra.mxu0 0.0
        %294 = vmatprep.subr.mxu0 0.0
        %295 = vmatpush2.msra.mxu0 0.0
        %296 = vmatprep.subr.mxu0 0.0
        %297 = vmatpush2.msra.mxu0 0.0
        %298 = vmatprep.subr.mxu0 0.0
        %299 = vmatpush2.msra.mxu0 0.0
        %300 = vmatprep.subr.mxu0 0.0
        %301 = vmatpush2.msra.mxu0 0.0
        %302 = vmatprep.subr.mxu0 0.0
        %303 = vmatpush2.msra.mxu0 0.0
        %304 = vmatprep.subr.mxu0 0.0
        %305 = vmatpush2.msra.mxu0 0.0
        %306 = vmatprep.subr.mxu0 0.0
        %307 = vmatpush2.msra.mxu0 0.0
        %308 = vmatprep.subr.mxu0 0.0
        %309 = vmatpush2.msra.mxu0 0.0
        %310 = vmatprep.subr.mxu0 0.0
        %311 = vmatpush2.msra.mxu0 0.0
        %312 = vmatprep.subr.mxu0 0.0
        %313 = vmatpush2.msra.mxu0 0.0
        %314 = vmatprep.subr.mxu0 0.0
        %315 = vmatpush2.msra.mxu0 0.0
        %316 = vmatprep.subr.mxu0 0.0
        %317 = vmatpush2.msra.mxu0 0.0
        %318 = vmatprep.subr.mxu0 0.0
        %319 = vmatpush2.msra.mxu0 0.0
        %320 = vmatprep.subr.mxu0 0.0
        %321 = vmatpush2.msra.mxu0 0.0
        %322 = vmatprep.mubr.f32.mxu0 0.0
        %323 = vmatmul.mubr.f32.gmra.mxu0 %v241
        %v324 = vpop.f32.mrf.mxu0
        %v325 = vadd.f32 0.0, %v324
        %v326 = vpop.f32.mrf.mxu0
        %327 = vdwg.mxu0
        %328 = vst [vmem:[#allocation2] sm:$0xff] %v325
        %v329 = vld [vmem:[#allocation9] sm:$0x1]
        %v330 = vld [vmem:[#allocation9 + $0x1] sm:$0x1]
        %v331 = vld [vmem:[#allocation9 + $0x2] sm:$0x1]
        %v332 = vld [vmem:[#allocation9 + $0x3] sm:$0x1]
        %v333 = vld [vmem:[#allocation9 + $0x4] sm:$0x1]
        %v334 = vmul.f32 %v333, 0.001
        %v335 = vsub.f32 1.0, %v334
        %v336 = vmul.f32 %v334, %v330
        %p337 = scmp.eq.s32.totalorder %s26, 0
        // Predicated region
        $region45: #{tpu_custom_call.1} parent=31 // pred_check
          %p338 = pneg %p337
        $region46: #{tpu_custom_call.1} parent=31 // pred_check_branch
          %340 = sbr.rel (%p338) target = $region48
        $region47: #{tpu_custom_call.1} parent=31 // pred_region
          %341 = vst [vmem:[#allocation3] sm:$0x1] %v330
          %342 = vst [vmem:[#allocation3 + $0x1] sm:$0x1] 0.0
        $region48: #{tpu_custom_call.1} parent=31 // pred_fallthru
          _
        %s343 = scalar_select %p337, 1, 0
        %s344 = scvt.s32.f32 %s343
        %v345 = vld [vmem:[#allocation3] sm:$0x1]
        %v346 = vld [vmem:[#allocation3 + $0x1] sm:$0x1]
        %v347 = vld [vmem:[#allocation2] sm:$0xff]
        %v348 = vstv %s344
        %v349 = vsub.f32 1.0, %v348
        %v350 = vmul.f32 %v345, %v335
        %v351 = vadd.f32 %v350, %v336
        %vm352 = vcmp.eq.f32.partialorder %v346, 0.0
        %v353 = vsel %vm352, %v347, 0.0
        %v354 = vadd.f32 %v351, %v353
        %vm355 = vcmp.gt.f32.partialorder %v346, 0.0
        %v356 = vsub.f32 %v346, 0.001
        %v357 = vsel %vm355, %v356, 0.0
        %vm358 = vcmp.ge.f32.partialorder %v354, %v329
        %v359 = vsel %vm358, 1.0, 0.0
        %v360 = vsel %vm358, %v332, %v357
        %v361 = vsel %vm358, %v331, %v354
        %v362 = vmul.f32 %v359, %v349
        %v363 = vmul.f32 %v361, %v349
        %v364 = vmul.f32 %v345, %v348
        %v365 = vadd.f32 %v363, %v364
        %v366 = vmul.f32 %v360, %v349
        %v367 = vmul.f32 %v346, %v348
        %v368 = vadd.f32 %v366, %v367
        %369 = vst [vmem:[%s240] sm:$0x1] %v362
        %v370 = vmul.f32 %v365, %v335
        %v371 = vadd.f32 %v370, %v336
        %vm372 = vcmp.eq.f32.partialorder %v368, 0.0
        %v374 = vrot.slane %v347, 1
        %v376 = vsel %vm372, %v374, 0.0
        %v377 = vadd.f32 %v371, %v376
        %vm378 = vcmp.gt.f32.partialorder %v368, 0.0
        %v379 = vsub.f32 %v368, 0.001
        %v380 = vsel %vm378, %v379, 0.0
        %vm381 = vcmp.ge.f32.partialorder %v377, %v329
        %v382 = vsel %vm381, 1.0, 0.0
        %v383 = vsel %vm381, %v332, %v380
        %v384 = vsel %vm381, %v331, %v377
        %s385 = sadd.s32 0, 1
        %s386 = scalar_lea.vmem %s240, %s385 [#allocation10]
        %387 = vst [vmem:[%s386] sm:$0x1] %v382
        %v388 = vmul.f32 %v384, %v335
        %v389 = vadd.f32 %v388, %v336
        %vm390 = vcmp.eq.f32.partialorder %v383, 0.0
        %v391 = vrot.slane %v347, 2
        %v393 = vsel %vm390, %v391, 0.0
        %v394 = vadd.f32 %v389, %v393
        %vm395 = vcmp.gt.f32.partialorder %v383, 0.0
        %v396 = vsub.f32 %v383, 0.001
        %v397 = vsel %vm395, %v396, 0.0
        %vm398 = vcmp.ge.f32.partialorder %v394, %v329
        %v399 = vsel %vm398, 1.0, 0.0
        %v400 = vsel %vm398, %v332, %v397
        %v401 = vsel %vm398, %v331, %v394
        %s402 = sadd.s32 0, 2
        %s403 = scalar_lea.vmem %s240, %s402 [#allocation10]
        %404 = vst [vmem:[%s403] sm:$0x1] %v399
        %v405 = vmul.f32 %v401, %v335
        %v406 = vadd.f32 %v405, %v336
        %vm407 = vcmp.eq.f32.partialorder %v400, 0.0
        %v408 = vrot.slane %v347, 3
        %v410 = vsel %vm407, %v408, 0.0
        %v411 = vadd.f32 %v406, %v410
        %vm412 = vcmp.gt.f32.partialorder %v400, 0.0
        %v413 = vsub.f32 %v400, 0.001
        %v414 = vsel %vm412, %v413, 0.0
        %vm415 = vcmp.ge.f32.partialorder %v411, %v329
        %v416 = vsel %vm415, 1.0, 0.0
        %v417 = vsel %vm415, %v332, %v414
        %v418 = vsel %vm415, %v331, %v411
        %s419 = sadd.s32 0, 3
        %s420 = scalar_lea.vmem %s240, %s419 [#allocation10]
        %421 = vst [vmem:[%s420] sm:$0x1] %v416
        %v422 = vmul.f32 %v418, %v335
        %v423 = vadd.f32 %v422, %v336
        %vm424 = vcmp.eq.f32.partialorder %v417, 0.0
        %v425 = vrot.slane %v347, 4
        %v427 = vsel %vm424, %v425, 0.0
        %v428 = vadd.f32 %v423, %v427
        %vm429 = vcmp.gt.f32.partialorder %v417, 0.0
        %v430 = vsub.f32 %v417, 0.001
        %v431 = vsel %vm429, %v430, 0.0
        %vm432 = vcmp.ge.f32.partialorder %v428, %v329
        %v433 = vsel %vm432, 1.0, 0.0
        %v434 = vsel %vm432, %v332, %v431
        %v435 = vsel %vm432, %v331, %v428
        %s436 = sadd.s32 0, 4
        %s437 = scalar_lea.vmem %s240, %s436 [#allocation10]
        %438 = vst [vmem:[%s437] sm:$0x1] %v433
        %v439 = vmul.f32 %v435, %v335
        %v440 = vadd.f32 %v439, %v336
        %vm441 = vcmp.eq.f32.partialorder %v434, 0.0
        %v442 = vrot.slane %v347, 5
        %v444 = vsel %vm441, %v442, 0.0
        %v445 = vadd.f32 %v440, %v444
        %vm446 = vcmp.gt.f32.partialorder %v434, 0.0
        %v447 = vsub.f32 %v434, 0.001
        %v448 = vsel %vm446, %v447, 0.0
        %vm449 = vcmp.ge.f32.partialorder %v445, %v329
        %v450 = vsel %vm449, 1.0, 0.0
        %v451 = vsel %vm449, %v332, %v448
        %v452 = vsel %vm449, %v331, %v445
        %s453 = sadd.s32 0, 5
        %s454 = scalar_lea.vmem %s240, %s453 [#allocation10]
        %455 = vst [vmem:[%s454] sm:$0x1] %v450
        %v456 = vmul.f32 %v452, %v335
        %v457 = vadd.f32 %v456, %v336
        %vm458 = vcmp.eq.f32.partialorder %v451, 0.0
        %v459 = vrot.slane %v347, 6
        %v461 = vsel %vm458, %v459, 0.0
        %v462 = vadd.f32 %v457, %v461
        %vm463 = vcmp.gt.f32.partialorder %v451, 0.0
        %v464 = vsub.f32 %v451, 0.001
        %v465 = vsel %vm463, %v464, 0.0
        %vm466 = vcmp.ge.f32.partialorder %v462, %v329
        %v467 = vsel %vm466, 1.0, 0.0
        %v468 = vsel %vm466, %v332, %v465
        %v469 = vsel %vm466, %v331, %v462
        %s470 = sadd.s32 0, 6
        %s471 = scalar_lea.vmem %s240, %s470 [#allocation10]
        %472 = vst [vmem:[%s471] sm:$0x1] %v467
        %v473 = vmul.f32 %v469, %v335
        %v474 = vadd.f32 %v473, %v336
        %vm475 = vcmp.eq.f32.partialorder %v468, 0.0
        %v476 = vrot.slane %v347, 7
        %v478 = vsel %vm475, %v476, 0.0
        %v479 = vadd.f32 %v474, %v478
        %vm480 = vcmp.gt.f32.partialorder %v468, 0.0
        %v481 = vsub.f32 %v468, 0.001
        %v482 = vsel %vm480, %v481, 0.0
        %vm483 = vcmp.ge.f32.partialorder %v479, %v329
        %v484 = vsel %vm483, 1.0, 0.0
        %v485 = vsel %vm483, %v332, %v482
        %v486 = vsel %vm483, %v331, %v479
        %s487 = sadd.s32 0, 7
        %s488 = scalar_lea.vmem %s240, %s487 [#allocation10]
        %489 = vst [vmem:[%s488] sm:$0x1] %v484
        %490 = vst [vmem:[#allocation3] sm:$0x1] %v486
        %491 = vst [vmem:[#allocation3 + $0x1] sm:$0x1] %v485
        %s492 = sand.u32 %s121, 1
        %s493 = scalar_lea.sflag [#allocation6], %s492
        %s494 = sand.u32 %s121, 1
        %s495 = smul.addr %s494, 8
        %s496 = scalar_lea.vmem [#allocation10], %s495
        // Predicated region
        $region49: #{tpu_custom_call.1} parent=31 // pred_check
          %p497 = pneg %p131
        $region50: #{tpu_custom_call.1} parent=31 // pred_check_branch
          %499 = sbr.rel (%p497) target = $region52
        $region51: #{tpu_custom_call.1} parent=31 // pred_region
          %s501 = ssub.s32 128, 128
          %502 = vsyncadd %s493, %s501
          %s503 = sadd.s32 %s25, %s26
          %s504 = smul.addr %s503, 128
          %s505 = scalar_lea.hbm %s3, %s504
          %s507 = sshll.u32 %s496, 4
          %s508 = int_to_ptr.vmem [resolvable:$true] %s507
          %510 = dma.vmem_to_hbm [thread:$0]  %s508, 128, %s505, %s493
        $region52: #{tpu_custom_call.1} parent=31 // pred_fallthru
          _
      $region32: #{tpu_custom_call.1} parent=5 // pred_fallthru
        _
      %p511 = scmp.le.s32.totalorder 2, %s16
      // Predicated region
      $region53: #{tpu_custom_call.1} parent=5 // pred_check
        %p512 = pneg %p511
      $region54: #{tpu_custom_call.1} parent=5 // pred_check_branch
        %514 = sbr.rel (%p512) target = $region56
      $region55: #{tpu_custom_call.1} parent=5 // pred_region
        %s515 = ssub.s32 %s16, 2
        // Predicated region
        $region57: #{tpu_custom_call.1} parent=55 // pred_check
          %p516 = pneg %p137
        $region58: #{tpu_custom_call.1} parent=55 // pred_check_branch
          %518 = sbr.rel (%p516) target = $region60
        $region59: #{tpu_custom_call.1} parent=55 // pred_region
          %s519 = sand.u32 %s122, 1
          %s520 = scalar_lea.sflag [#allocation6], %s519
          %s521 = sand.u32 %s122, 1
          %s522 = smul.addr %s521, 8
          %s523 = scalar_lea.vmem [#allocation10], %s522
          %524 = dma.done %s520, 128
        $region60: #{tpu_custom_call.1} parent=55 // pred_fallthru
          _
      $region56: #{tpu_custom_call.1} parent=5 // pred_fallthru
        _
    $region6: #{tpu_custom_call.1} parent=1 // loop_footer
      %s20 = sadd.s32 1, %s16
    $region7: #{tpu_custom_call.1} parent=1 // loop_footer_branch
      %15 = sbr.rel target = $region3
    $region8: #{tpu_custom_call.1} parent=1 // loop_exit
      _
    %525 = vsyncpa [#allocation5], 1
    %s526 = scalar_lea.sflag [#allocation5], 1
    %527 = vsyncpa %s526, 1
    %528 = vsyncpa [#allocation8], 1
    %529 = vsyncpa [#allocation6], 1
    %s530 = scalar_lea.sflag [#allocation6], 1
    %531 = vsyncpa %s530, 1

</llo_original>
